<compile_context>
chip_gen: v7x
topology: tpu7x:2x2x1
jax: 0.10.0
libtpu: 0.0.40
codegen_flags: <defaults>
</compile_context>

<pallas_src>
import jax
import jax.numpy as jnp
from jax import lax
from jax.experimental import pallas as pl
from jax.experimental.pallas import tpu as pltpu


def _make_kernel(C, Ci, N, Ns, tq, use_bf16):
    def kernel(xfull_ref, xq_ref,
               wth_ref, bth_ref,
               wgp_ref, bgp_ref,
               wout_ref, bout_ref,
               out_ref, g_scr, phi_scr):
        q = pl.program_id(1)

        # Compute pooled g / phi projections once per batch element and cache
        # them in VMEM scratch (q axis is "arbitrary" => sequential per b).
        @pl.when(q == 0)
        def _():
            x_full = xfull_ref[0]                                          # (C, N)
            # fused [g | phi] 1x1 conv: one matmul instead of 8 tiny ones
            gp = jnp.dot(wgp_ref[...], x_full,
                         preferred_element_type=jnp.float32) + bgp_ref[...]  # (2Ci, N)
            # 2x2 max-pool == max over the 4 window-position lane slices
            pooled = gp[:, 0:Ns]
            for k in range(1, 4):
                pooled = jnp.maximum(pooled, gp[:, k * Ns:(k + 1) * Ns])     # (2Ci, Ns)
            g_scr[...] = pooled[0:Ci, :]
            phi_scr[...] = pooled[Ci:2 * Ci, :]

        x_q = xq_ref[0]                                                     # (C, tq)

        # theta: 1x1 conv as W^T @ X (lane axis = queries)
        theta = jnp.dot(wth_ref[...], x_q,
                        preferred_element_type=jnp.float32) + bth_ref[...]  # (Ci, tq)

        phi = phi_scr[...]                                                  # (Ci, Ns)
        g = g_scr[...]                                                      # (Ci, Ns)

        if use_bf16:
            theta_m = theta.astype(jnp.bfloat16)
            phi_m = phi.astype(jnp.bfloat16)
        else:
            theta_m, phi_m = theta, phi

        # f^T = phi^T-contract-theta : (Ns, tq); softmax over keys (axis 0)
        f = lax.dot_general(phi_m, theta_m, (((0,), (0,)), ((), ())),
                            preferred_element_type=jnp.float32)             # (Ns, tq)
        m = jnp.max(f, axis=0, keepdims=True)
        p = jnp.exp(f - m)
        s = jnp.sum(p, axis=0, keepdims=True)
        fdc = p * pl.reciprocal(s, approx=True)                             # (Ns, tq)

        if use_bf16:
            fdc_m = fdc.astype(jnp.bfloat16)
            g_m = g.astype(jnp.bfloat16)
        else:
            fdc_m, g_m = fdc, g

        # y^T = g @ softmax(f)^T : (Ci, tq)
        y = jnp.dot(g_m, fdc_m, preferred_element_type=jnp.float32)

        # W-conv with BN folded into the weight, then shift + residual.
        w_y = jnp.dot(wout_ref[...], y,
                      preferred_element_type=jnp.float32) + bout_ref[...]   # (C, tq)
        out_ref[0] = w_y + x_q

    return kernel


def nonlocal_block_embedded_gaussian(x, params, *, tq=128, use_bf16_matmul=False):
    B, C, H, W = x.shape
    assert H % 2 == 0 and W % 2 == 0
    N = H * W
    Ns = (H // 2) * (W // 2)
    Ci = params['w_theta'].shape[1]

    # Query tile must be a multiple of 128 lanes (or the full axis).
    # TODO(synk): for v7x (64 MiB VMEM) re-derive tq at large C/N and set
    # vmem_limit_bytes accordingly; 128 is plenty for these shapes.
    if tq % 128 != 0 or N % tq != 0:
        tq = N
    Nq = N // tq

    # Window-permuted, channels-first, lane-dense layout: (B, C, N) with
    # n = (dh*2 + dw) * Ns + (h2 * (W//2) + w2).  This is the only copy of x
    # passed to the kernel; the permutation is undone after the call.
    x_perm = x.reshape(B, C, H // 2, 2, W // 2, 2)
    x_perm = jnp.transpose(x_perm, (0, 1, 3, 5, 2, 4)).reshape(B, C, N)

    # Pre-transposed / fused / folded weights.
    w_theta_t = jnp.transpose(params['w_theta'])                            # (Ci, C)
    b_theta_t = params['b_theta'].reshape(Ci, 1)
    w_gphi_t = jnp.concatenate(
        [jnp.transpose(params['w_g']), jnp.transpose(params['w_phi'])], axis=0)  # (2Ci, C)
    b_gphi_t = jnp.concatenate(
        [params['b_g'], params['b_phi']], axis=1).reshape(2 * Ci, 1)
    bn_scale = params['bn_scale'].reshape(C)
    bn_shift = params['bn_shift'].reshape(C)
    w_out_t = jnp.transpose(params['w_W'] * bn_scale[None, :])              # (C, Ci)
    shift_out = (params['b_W'].reshape(C) * bn_scale + bn_shift).reshape(C, 1)

    kernel = _make_kernel(C, Ci, N, Ns, tq, use_bf16_matmul)

    out_perm = pl.pallas_call(
        kernel,
        out_shape=jax.ShapeDtypeStruct((B, C, N), jnp.float32),
        grid_spec=pltpu.PrefetchScalarGridSpec(
            num_scalar_prefetch=0,
            grid=(B, Nq),
            in_specs=[
                # full x block: constant over q => DMA'd once per batch element
                pl.BlockSpec((1, C, N), lambda b, q: (b, 0, 0)),
                # query tile of the same array
                pl.BlockSpec((1, C, tq), lambda b, q: (b, 0, q)),
                # weights / biases: constant block index => fetched once
                pl.BlockSpec((Ci, C), lambda b, q: (0, 0)),
                pl.BlockSpec((Ci, 1), lambda b, q: (0, 0)),
                pl.BlockSpec((2 * Ci, C), lambda b, q: (0, 0)),
                pl.BlockSpec((2 * Ci, 1), lambda b, q: (0, 0)),
                pl.BlockSpec((C, Ci), lambda b, q: (0, 0)),
                pl.BlockSpec((C, 1), lambda b, q: (0, 0)),
            ],
            out_specs=pl.BlockSpec((1, C, tq), lambda b, q: (b, 0, q)),
            scratch_shapes=[pltpu.VMEM((Ci, Ns), jnp.float32),   # g  (pooled)
                            pltpu.VMEM((Ci, Ns), jnp.float32)],  # phi (pooled)
        ),
        compiler_params=pltpu.CompilerParams(
            dimension_semantics=("parallel", "arbitrary")),
    )(x_perm, x_perm,
      w_theta_t, b_theta_t, w_gphi_t, b_gphi_t, w_out_t, shift_out)

    # Undo the window permutation back to NCHW.
    out = out_perm.reshape(B, C, 2, 2, H // 2, W // 2)
    out = jnp.transpose(out, (0, 1, 4, 2, 5, 3)).reshape(B, C, H, W)
    return out


def ref_forward(x, params):
    """Pure-JAX reference mirroring the PyTorch _embedded_gaussian path."""
    B, C, H, W = x.shape
    Ci = params['w_theta'].shape[1]

    def conv1x1(t, w, b):
        return jnp.einsum('bchw,cd->bdhw', t, w) + b[0][None, :, None, None]

    def maxpool2(t):
        b, c, h, w = t.shape
        return jnp.max(t.reshape(b, c, h // 2, 2, w // 2, 2), axis=(3, 5))

    g_x = maxpool2(conv1x1(x, params['w_g'], params['b_g'])).reshape(B, Ci, -1)
    g_x = jnp.transpose(g_x, (0, 2, 1))
    theta_x = conv1x1(x, params['w_theta'], params['b_theta']).reshape(B, Ci, -1)
    theta_x = jnp.transpose(theta_x, (0, 2, 1))
    phi_x = maxpool2(conv1x1(x, params['w_phi'], params['b_phi'])).reshape(B, Ci, -1)
    f = jnp.matmul(theta_x, phi_x)
    f_div_c = jax.nn.softmax(f, axis=-1)
    y = jnp.matmul(f_div_c, g_x)
    y = jnp.transpose(y, (0, 2, 1)).reshape(B, Ci, H, W)
    w_y = conv1x1(y, params['w_W'], params['b_W'])
    w_y = (w_y * params['bn_scale'][0][None, :, None, None]
           + params['bn_shift'][0][None, :, None, None])
    return w_y + x


if __name__ == "__main__":
    key = jax.random.PRNGKey(0)
    B, C, H, W = 2, 8, 16, 16          # x: NCHW, in_channels=8
    Ci = C // 2                        # inter_channels = in_channels // 2
    ks = jax.random.split(key, 12)

    def init(k, shape, scale=0.2):
        return (scale * jax.random.normal(k, shape)).astype(jnp.float32)

    # Inference-mode BatchNorm folded to scale/shift (running_mean=0, running_var=1).
    # NOTE: PyTorch's __init__ zero-inits the BN affine params (block == identity at
    # init); we use small random values so the full compute path is exercised.
    eps = 1e-5
    bn_gamma = init(ks[9], (C,))
    bn_beta = init(ks[10], (C,))
    bn_mean = jnp.zeros((C,), jnp.float32)
    bn_var = jnp.ones((C,), jnp.float32)
    inv_std = 1.0 / jnp.sqrt(bn_var + eps)
    bn_scale = (bn_gamma * inv_std).reshape(1, C)
    bn_shift = (bn_beta - bn_mean * bn_gamma * inv_std).reshape(1, C)

    params = dict(
        w_theta=init(ks[0], (C, Ci)), b_theta=init(ks[1], (1, Ci)),
        w_g=init(ks[2], (C, Ci)),     b_g=init(ks[3], (1, Ci)),
        w_phi=init(ks[4], (C, Ci)),   b_phi=init(ks[5], (1, Ci)),
        w_W=init(ks[6], (Ci, C)),     b_W=init(ks[7], (1, C)),
        bn_scale=bn_scale, bn_shift=bn_shift,
    )

    x = jax.random.normal(ks[8], (B, C, H, W), dtype=jnp.float32)

    out = nonlocal_block_embedded_gaussian(x, params)   # f32 MXU path for the test
    out = jax.block_until_ready(out)

    ref = ref_forward(x, params)
    assert out.shape == x.shape
    max_err = float(jnp.max(jnp.abs(out - ref)))
    # Tolerance loosened slightly vs 1e-4 because softmax normalization uses the
    # EUP approximate reciprocal (pl.reciprocal(approx=True)).
    assert jnp.allclose(out, ref, atol=2e-3, rtol=2e-3), max_err
    print("KERNEL_OK")
</pallas_src>

<mosaic_0001>
module attributes {stable_mosaic.version = 11 : i64} {
  func.func @kernel(%arg0: i32, %arg1: i32, %arg2: memref<1x8x256xf32, #tpu.memory_space<vmem>>, %arg3: memref<1x8x128xf32, #tpu.memory_space<vmem>>, %arg4: memref<4x8xf32, #tpu.memory_space<vmem>>, %arg5: memref<4x1xf32, #tpu.memory_space<vmem>>, %arg6: memref<8x8xf32, #tpu.memory_space<vmem>>, %arg7: memref<8x1xf32, #tpu.memory_space<vmem>>, %arg8: memref<8x4xf32, #tpu.memory_space<vmem>>, %arg9: memref<8x1xf32, #tpu.memory_space<vmem>>, %arg10: memref<1x8x128xf32, #tpu.memory_space<vmem>>, %arg11: memref<4x64xf32, #tpu.memory_space<vmem>>, %arg12: memref<4x64xf32, #tpu.memory_space<vmem>>) attributes {dimension_semantics = [#tpu.dimension_semantics<parallel>, #tpu.dimension_semantics<arbitrary>], iteration_bounds = array<i64: 2, 2>, scalar_prefetch = 0 : i64, scratch_operands = 2 : i64, tpu.core_type = #tpu.core_type<tc>, window_params = [{transform_indices = @transform_0, window_bounds = array<i64: 1, 8, 256>}, {transform_indices = @transform_1, window_bounds = array<i64: 1, 8, 128>}, {pipeline_mode = #tpu.pipeline_mode<synchronous>, transform_indices = @transform_2, window_bounds = array<i64: 4, 8>}, {pipeline_mode = #tpu.pipeline_mode<synchronous>, transform_indices = @transform_3, window_bounds = array<i64: 4, 1>}, {pipeline_mode = #tpu.pipeline_mode<synchronous>, transform_indices = @transform_4, window_bounds = array<i64: 8, 8>}, {pipeline_mode = #tpu.pipeline_mode<synchronous>, transform_indices = @transform_5, window_bounds = array<i64: 8, 1>}, {pipeline_mode = #tpu.pipeline_mode<synchronous>, transform_indices = @transform_6, window_bounds = array<i64: 8, 4>}, {pipeline_mode = #tpu.pipeline_mode<synchronous>, transform_indices = @transform_7, window_bounds = array<i64: 8, 1>}, {transform_indices = @transform_8, window_bounds = array<i64: 1, 8, 128>}]} {
    %c0_i32 = arith.constant 0 : i32
    %0 = arith.cmpi eq, %arg1, %c0_i32 : i32
    %1 = arith.extui %0 : i1 to i32
    %c0_i32_0 = arith.constant 0 : i32
    %2 = arith.cmpi ne, %1, %c0_i32_0 : i32
    scf.if %2 {
      %c0_23 = arith.constant 0 : index
      %c0_24 = arith.constant 0 : index
      %c0_25 = arith.constant 0 : index
      %33 = vector.load %arg2[%c0_23, %c0_24, %c0_25] : memref<1x8x256xf32, #tpu.memory_space<vmem>>, vector<1x8x256xf32>
      %34 = vector.shape_cast %33 : vector<1x8x256xf32> to vector<8x256xf32>
      %c0_26 = arith.constant 0 : index
      %c0_27 = arith.constant 0 : index
      %35 = vector.load %arg6[%c0_26, %c0_27] : memref<8x8xf32, #tpu.memory_space<vmem>>, vector<8x8xf32>
      %cst_28 = arith.constant dense<0.000000e+00> : vector<8x256xf32>
      %36 = tpu.matmul %35, %34, %cst_28 {dimension_numbers = #tpu.dot_dimension_numbers<[1], [0], [0], [1], [0, 0, 1, 1], [], []>} : vector<8x8xf32>, vector<8x256xf32>, vector<8x256xf32> -> vector<8x256xf32>
      %c0_29 = arith.constant 0 : index
      %c0_30 = arith.constant 0 : index
      %37 = vector.load %arg7[%c0_29, %c0_30] : memref<8x1xf32, #tpu.memory_space<vmem>>, vector<8x1xf32>
      %38 = vector.broadcast %37 : vector<8x1xf32> to vector<8x256xf32>
      %39 = arith.addf %36, %38 : vector<8x256xf32>
      %40 = vector.extract_strided_slice %39 {offsets = [0, 0], sizes = [8, 64], strides = [1, 1]} : vector<8x256xf32> to vector<8x64xf32>
      %41 = vector.extract_strided_slice %39 {offsets = [0, 64], sizes = [8, 64], strides = [1, 1]} : vector<8x256xf32> to vector<8x64xf32>
      %42 = arith.maximumf %40, %41 : vector<8x64xf32>
      %43 = vector.extract_strided_slice %39 {offsets = [0, 128], sizes = [8, 64], strides = [1, 1]} : vector<8x256xf32> to vector<8x64xf32>
      %44 = arith.maximumf %42, %43 : vector<8x64xf32>
      %45 = vector.extract_strided_slice %39 {offsets = [0, 192], sizes = [8, 64], strides = [1, 1]} : vector<8x256xf32> to vector<8x64xf32>
      %46 = arith.maximumf %44, %45 : vector<8x64xf32>
      %47 = vector.extract_strided_slice %46 {offsets = [0, 0], sizes = [4, 64], strides = [1, 1]} : vector<8x64xf32> to vector<4x64xf32>
      %c0_31 = arith.constant 0 : index
      %c0_32 = arith.constant 0 : index
      %48 = vector.load %arg11[%c0_31, %c0_32] : memref<4x64xf32, #tpu.memory_space<vmem>>, vector<4x64xf32>
      tpu.vector_store %arg11[%c0_31, %c0_32], %47 {strides = array<i32>} : memref<4x64xf32, #tpu.memory_space<vmem>>, vector<4x64xf32>,
      %49 = vector.extract_strided_slice %46 {offsets = [4, 0], sizes = [4, 64], strides = [1, 1]} : vector<8x64xf32> to vector<4x64xf32>
      %c0_33 = arith.constant 0 : index
      %c0_34 = arith.constant 0 : index
      %50 = vector.load %arg12[%c0_33, %c0_34] : memref<4x64xf32, #tpu.memory_space<vmem>>, vector<4x64xf32>
      tpu.vector_store %arg12[%c0_33, %c0_34], %49 {strides = array<i32>} : memref<4x64xf32, #tpu.memory_space<vmem>>, vector<4x64xf32>,
    } else {
    }
    %c0 = arith.constant 0 : index
    %c0_1 = arith.constant 0 : index
    %c0_2 = arith.constant 0 : index
    %3 = vector.load %arg3[%c0, %c0_1, %c0_2] : memref<1x8x128xf32, #tpu.memory_space<vmem>>, vector<1x8x128xf32>
    %4 = vector.shape_cast %3 : vector<1x8x128xf32> to vector<8x128xf32>
    %c0_3 = arith.constant 0 : index
    %c0_4 = arith.constant 0 : index
    %5 = vector.load %arg4[%c0_3, %c0_4] : memref<4x8xf32, #tpu.memory_space<vmem>>, vector<4x8xf32>
    %cst = arith.constant dense<0.000000e+00> : vector<4x128xf32>
    %6 = tpu.matmul %5, %4, %cst {dimension_numbers = #tpu.dot_dimension_numbers<[1], [0], [0], [1], [0, 0, 1, 1], [], []>} : vector<4x8xf32>, vector<8x128xf32>, vector<4x128xf32> -> vector<4x128xf32>
    %c0_5 = arith.constant 0 : index
    %c0_6 = arith.constant 0 : index
    %7 = vector.load %arg5[%c0_5, %c0_6] : memref<4x1xf32, #tpu.memory_space<vmem>>, vector<4x1xf32>
    %8 = vector.broadcast %7 : vector<4x1xf32> to vector<4x128xf32>
    %9 = arith.addf %6, %8 : vector<4x128xf32>
    %c0_7 = arith.constant 0 : index
    %c0_8 = arith.constant 0 : index
    %10 = vector.load %arg12[%c0_7, %c0_8] : memref<4x64xf32, #tpu.memory_space<vmem>>, vector<4x64xf32>
    %c0_9 = arith.constant 0 : index
    %c0_10 = arith.constant 0 : index
    %11 = vector.load %arg11[%c0_9, %c0_10] : memref<4x64xf32, #tpu.memory_space<vmem>>, vector<4x64xf32>
    %cst_11 = arith.constant dense<0.000000e+00> : vector<64x128xf32>
    %12 = tpu.matmul %10, %9, %cst_11 {dimension_numbers = #tpu.dot_dimension_numbers<[0], [0], [1], [1], [0, 1, 1, 1], [], []>} : vector<4x64xf32>, vector<4x128xf32>, vector<64x128xf32> -> vector<64x128xf32>
    %cst_12 = arith.constant dense<0xFF800000> : vector<128xf32>
    %13 = vector.multi_reduction <maximumf>, %12, %cst_12 [0] : vector<64x128xf32> to vector<128xf32>
    %14 = vector.shape_cast %13 : vector<128xf32> to vector<1x128xf32>
    %15 = vector.broadcast %14 : vector<1x128xf32> to vector<64x128xf32>
    %16 = arith.subf %12, %15 : vector<64x128xf32>
    %17 = math.exp %16 : vector<64x128xf32>
    %cst_13 = arith.constant dense<0.000000e+00> : vector<128xf32>
    %18 = vector.multi_reduction <add>, %17, %cst_13 [0] : vector<64x128xf32> to vector<128xf32>
    %19 = vector.shape_cast %18 : vector<128xf32> to vector<1x128xf32>
    %20 = tpu.reciprocal %19 {approx = true} : vector<1x128xf32> -> vector<1x128xf32>
    %21 = vector.broadcast %20 : vector<1x128xf32> to vector<64x128xf32>
    %22 = arith.mulf %17, %21 : vector<64x128xf32>
    %cst_14 = arith.constant dense<0.000000e+00> : vector<4x128xf32>
    %23 = tpu.matmul %11, %22, %cst_14 {dimension_numbers = #tpu.dot_dimension_numbers<[1], [0], [0], [1], [0, 0, 1, 1], [], []>} : vector<4x64xf32>, vector<64x128xf32>, vector<4x128xf32> -> vector<4x128xf32>
    %c0_15 = arith.constant 0 : index
    %c0_16 = arith.constant 0 : index
    %24 = vector.load %arg8[%c0_15, %c0_16] : memref<8x4xf32, #tpu.memory_space<vmem>>, vector<8x4xf32>
    %cst_17 = arith.constant dense<0.000000e+00> : vector<8x128xf32>
    %25 = tpu.matmul %24, %23, %cst_17 {dimension_numbers = #tpu.dot_dimension_numbers<[1], [0], [0], [1], [0, 0, 1, 1], [], []>} : vector<8x4xf32>, vector<4x128xf32>, vector<8x128xf32> -> vector<8x128xf32>
    %c0_18 = arith.constant 0 : index
    %c0_19 = arith.constant 0 : index
    %26 = vector.load %arg9[%c0_18, %c0_19] : memref<8x1xf32, #tpu.memory_space<vmem>>, vector<8x1xf32>
    %27 = vector.broadcast %26 : vector<8x1xf32> to vector<8x128xf32>
    %28 = arith.addf %25, %27 : vector<8x128xf32>
    %29 = arith.addf %28, %4 : vector<8x128xf32>
    %c0_20 = arith.constant 0 : index
    %c0_21 = arith.constant 0 : index
    %c0_22 = arith.constant 0 : index
    %30 = vector.load %arg10[%c0_20, %c0_21, %c0_22] : memref<1x8x128xf32, #tpu.memory_space<vmem>>, vector<1x8x128xf32>
    %31 = vector.shape_cast %30 : vector<1x8x128xf32> to vector<8x128xf32>
    %32 = vector.shape_cast %29 : vector<8x128xf32> to vector<1x8x128xf32>
    tpu.vector_store %arg10[%c0_20, %c0_21, %c0_22], %32 {strides = array<i32>} : memref<1x8x128xf32, #tpu.memory_space<vmem>>, vector<1x8x128xf32>,
    return
  }
  func.func @transform_0(%arg0: i32, %arg1: i32) -> (i32, i32, i32) {
    %c0_i32 = arith.constant 0 : i32
    %c0_i32_0 = arith.constant 0 : i32
    %c0_i32_1 = arith.constant 0 : i32
    return %arg0, %c0_i32, %c0_i32_0 : i32, i32, i32
  }
  func.func @transform_1(%arg0: i32, %arg1: i32) -> (i32, i32, i32) {
    %c0_i32 = arith.constant 0 : i32
    %c0_i32_0 = arith.constant 0 : i32
    return %arg0, %c0_i32, %arg1 : i32, i32, i32
  }
  func.func @transform_2(%arg0: i32, %arg1: i32) -> (i32, i32) {
    %c0_i32 = arith.constant 0 : i32
    %c0_i32_0 = arith.constant 0 : i32
    %c0_i32_1 = arith.constant 0 : i32
    return %c0_i32, %c0_i32_0 : i32, i32
  }
  func.func @transform_3(%arg0: i32, %arg1: i32) -> (i32, i32) {
    %c0_i32 = arith.constant 0 : i32
    %c0_i32_0 = arith.constant 0 : i32
    %c0_i32_1 = arith.constant 0 : i32
    return %c0_i32, %c0_i32_0 : i32, i32
  }
  func.func @transform_4(%arg0: i32, %arg1: i32) -> (i32, i32) {
    %c0_i32 = arith.constant 0 : i32
    %c0_i32_0 = arith.constant 0 : i32
    %c0_i32_1 = arith.constant 0 : i32
    return %c0_i32, %c0_i32_0 : i32, i32
  }
  func.func @transform_5(%arg0: i32, %arg1: i32) -> (i32, i32) {
    %c0_i32 = arith.constant 0 : i32
    %c0_i32_0 = arith.constant 0 : i32
    %c0_i32_1 = arith.constant 0 : i32
    return %c0_i32, %c0_i32_0 : i32, i32
  }
  func.func @transform_6(%arg0: i32, %arg1: i32) -> (i32, i32) {
    %c0_i32 = arith.constant 0 : i32
    %c0_i32_0 = arith.constant 0 : i32
    %c0_i32_1 = arith.constant 0 : i32
    return %c0_i32, %c0_i32_0 : i32, i32
  }
  func.func @transform_7(%arg0: i32, %arg1: i32) -> (i32, i32) {
    %c0_i32 = arith.constant 0 : i32
    %c0_i32_0 = arith.constant 0 : i32
    %c0_i32_1 = arith.constant 0 : i32
    return %c0_i32, %c0_i32_0 : i32, i32
  }
  func.func @transform_8(%arg0: i32, %arg1: i32) -> (i32, i32, i32) {
    %c0_i32 = arith.constant 0 : i32
    %c0_i32_0 = arith.constant 0 : i32
    return %arg0, %c0_i32, %arg1 : i32, i32, i32
  }
}

</mosaic_0001>

<llo_original>
// kernel: tpu_custom_call.1
$region0: #{tpu_custom_call.1}
  #allocation0 [shape = 'u32[]', space=smem, size = 0x4, offset = 0x4, fixed_abs, tag = 'smem constant byte address 0x4 - core index']
  #allocation1 [shape = 'u32[144,128]{1,0:T(1,128)}', space=vmem, size = 0x12000, scoped, tag = 'internal scratch']
  #allocation2 [shape = 'f32[4,64]{1,0:T(4,128)}', space=vmem, size = 0x800, scoped, tag = 'scratch operand']
  #allocation3 [shape = 'f32[4,64]{1,0:T(4,128)}', space=vmem, size = 0x800, scoped, tag = 'scratch operand']
  %s0 = inlined_call_operand.vmem [shape: f32[2,8,256], index: 0, kind: input, shape index: {}]
  %s1 = inlined_call_operand.hbm [shape: f32[2,8,256], index: 1, kind: input, shape index: {}]
  %s2 = inlined_call_operand.hbm [shape: f32[4,8], index: 2, kind: input, shape index: {}]
  %s3 = inlined_call_operand.vmem [shape: f32[4,1], index: 3, kind: input, shape index: {}]
  %s4 = inlined_call_operand.vmem [shape: f32[8,8], index: 4, kind: input, shape index: {}]
  %s5 = inlined_call_operand.vmem [shape: f32[8,1], index: 5, kind: input, shape index: {}]
  %s6 = inlined_call_operand.vmem [shape: f32[8,4], index: 6, kind: input, shape index: {}]
  %s7 = inlined_call_operand.vmem [shape: f32[8,1], index: 7, kind: input, shape index: {}]
  %s8 = inlined_call_operand.hbm [shape: f32[2,8,256], index: 8, kind: output, shape index: {}]
  %s9 = sld [smem:[#allocation0]]
  $region77: #{tpu_custom_call.1} parent=0
    _
  %s11 = ssub.s32 1, %s9
  %s12 = scalar_select 0, %s11, %s9
  $region1: #{tpu_custom_call.1} parent=0
    #allocation4 [shape = 'u8[8192]{0}', space=vmem, size = 0x2000, scoped, tag = 'input window, operand 1']
    #allocation5 [shape = 's32[2]{0}', space=sflag, size = 0x8, scoped, tag = 'scoped memory for tpu_custom_call.1']
    #allocation6 [shape = 's32[2]{0}', space=sflag, size = 0x8, scoped, tag = 'scoped memory for tpu_custom_call.1']
    #allocation7 [shape = 'u8[2048]{0}', space=vmem, size = 0x800, scoped, tag = 'input window, operand 2, single buffered']
    #allocation8 [shape = 's32[1]{0}', space=sflag, size = 0x4, scoped, tag = 'scoped memory for tpu_custom_call.1']
    #allocation9 [shape = 'u8[8192]{0}', space=vmem, size = 0x2000, scoped, tag = 'output window, operand 0']
    %13 = vsyncpa [#allocation5], 0
    %s14 = scalar_lea.sflag [#allocation5], 1
    %15 = vsyncpa %s14, 0
    %16 = vsyncpa [#allocation8], 0
    %17 = vsyncpa [#allocation6], 0
    %s18 = scalar_lea.sflag [#allocation6], 1
    %19 = vsyncpa %s18, 0
    loop: start=0, step=1, limit=6
    $region2: #{tpu_custom_call.1} parent=1 // loop_pre_header
      _
    $region3: #{tpu_custom_call.1} parent=1 // loop_header
      %s21 = sphi 0, %s25
      %p22 = scmp.ge.s32.totalorder %s21, 6
      %s28 = sphi 0, %s40
      %s29 = sphi 0, %s36
      %s30 = sphi 0, %s28
      %s31 = sphi 0, %s29
      %s32 = sphi 0, %s30
      %s33 = sphi 0, %s31
      %s43 = sphi 0, %s45
      %s46 = sphi 0, %s43
      %s47 = sphi 0, %s46
      %s63 = sphi 0, %s47
      %s71 = sphi 0, %s73
      %s74 = sphi 0, %s71
      %s75 = sphi 0, %s74
      %s91 = sphi 0, %s75
      %s95 = sphi 0, %s95
      %s97 = sphi 0, %s95
      %s98 = sphi 0, %s97
      %s112 = sphi 0, %s98
      %s116 = sphi 0, %s116
      %s118 = sphi 0, %s116
      %s119 = sphi 0, %s118
      %s133 = sphi 0, %s119
      %s137 = sphi 0, %s137
      %s139 = sphi 0, %s137
      %s140 = sphi 0, %s139
      %s154 = sphi 0, %s140
      %s158 = sphi 0, %s158
      %s160 = sphi 0, %s158
      %s161 = sphi 0, %s160
      %s175 = sphi 0, %s161
      %s179 = sphi 0, %s179
      %s181 = sphi 0, %s179
      %s182 = sphi 0, %s181
      %s196 = sphi 0, %s182
      %s200 = sphi 0, %s200
      %s202 = sphi 0, %s200
      %s203 = sphi 0, %s202
      %s217 = sphi 0, %s203
      %s225 = sphi 0, %s227
      %s228 = sphi 0, %s225
      %s229 = sphi 0, %s228
      %s245 = sphi 0, %s229
    $region4: #{tpu_custom_call.1} parent=1 // loop_header_branch
      %24 = sbr.rel (%p22) target = $region8
    $region5: #{tpu_custom_call.1} parent=1 // loop_body
      %s26 = ssub.s32 %s21, 1
      %s27 = ssub.s32 %s21, 2
      %s34 = sadd.s32 1, %s29
      %p35 = scmp.ge.s32.totalorder %s34, 2
      %s36 = scalar_select %p35, 0, %s34
      %s37 = sadd.s32 1, %s28
      %s38 = scalar_select %p35, %s37, %s28
      %p39 = scmp.ge.s32.totalorder %s38, 2
      %s40 = scalar_select %p39, 0, %s38
      %s41 = ssub.s32 %s28, %s40
      %p42 = scmp.eq.s32.totalorder %s41, 0
      %s44 = sadd.s32 %s43, 1
      %s45 = scalar_select %p42, %s43, %s44
      %p48 = pneg %p42
      %p49 = scmp.eq.s32.totalorder %s21, 3
      %p50 = por %p48, %p49
      %p51 = scmp.ne.s32.totalorder %s43, %s46
      %p52 = scmp.eq.s32.totalorder %s21, 0
      %p53 = por %p51, %p52
      %p54 = scmp.ne.s32.totalorder %s43, %s46
      %p55 = scmp.eq.s32.totalorder %s26, 3
      %p56 = por %p54, %p55
      %p57 = scmp.ne.s32.totalorder %s46, %s47
      %p58 = scmp.eq.s32.totalorder %s26, 0
      %p59 = por %p57, %p58
      %p60 = scmp.ne.s32.totalorder %s46, %s47
      %p61 = scmp.eq.s32.totalorder %s27, 3
      %p62 = por %p60, %p61
      %p64 = scmp.ne.s32.totalorder %s47, %s63
      %p65 = scmp.eq.s32.totalorder %s27, 0
      %p66 = por %p64, %p65
      %s67 = ssub.s32 %s28, %s40
      %s68 = ssub.s32 %s29, %s36
      %s69 = sor.u32 %s67, %s68
      %p70 = scmp.eq.s32.totalorder %s69, 0
      %s72 = sadd.s32 %s71, 1
      %s73 = scalar_select %p70, %s71, %s72
      %p76 = pneg %p70
      %p77 = scmp.eq.s32.totalorder %s21, 3
      %p78 = por %p76, %p77
      %p79 = scmp.ne.s32.totalorder %s71, %s74
      %p80 = scmp.eq.s32.totalorder %s21, 0
      %p81 = por %p79, %p80
      %p82 = scmp.ne.s32.totalorder %s71, %s74
      %p83 = scmp.eq.s32.totalorder %s26, 3
      %p84 = por %p82, %p83
      %p85 = scmp.ne.s32.totalorder %s74, %s75
      %p86 = scmp.eq.s32.totalorder %s26, 0
      %p87 = por %p85, %p86
      %p88 = scmp.ne.s32.totalorder %s74, %s75
      %p89 = scmp.eq.s32.totalorder %s27, 3
      %p90 = por %p88, %p89
      %p92 = scmp.ne.s32.totalorder %s75, %s91
      %p93 = scmp.eq.s32.totalorder %s27, 0
      %p94 = por %p92, %p93
      %s96 = sadd.s32 %s95, 1
      %p99 = scmp.eq.s32.totalorder %s21, 3
      %p100 = scmp.ne.s32.totalorder %s95, %s97
      %p101 = scmp.eq.s32.totalorder %s21, 0
      %p102 = por %p100, %p101
      %p103 = scmp.ne.s32.totalorder %s95, %s97
      %p104 = scmp.eq.s32.totalorder %s26, 3
      %p105 = por %p103, %p104
      %p106 = scmp.ne.s32.totalorder %s97, %s98
      %p107 = scmp.eq.s32.totalorder %s26, 0
      %p108 = por %p106, %p107
      %p109 = scmp.ne.s32.totalorder %s97, %s98
      %p110 = scmp.eq.s32.totalorder %s27, 3
      %p111 = por %p109, %p110
      %p113 = scmp.ne.s32.totalorder %s98, %s112
      %p114 = scmp.eq.s32.totalorder %s27, 0
      %p115 = por %p113, %p114
      %s117 = sadd.s32 %s116, 1
      %p120 = scmp.eq.s32.totalorder %s21, 3
      %p121 = scmp.ne.s32.totalorder %s116, %s118
      %p122 = scmp.eq.s32.totalorder %s21, 0
      %p123 = por %p121, %p122
      %p124 = scmp.ne.s32.totalorder %s116, %s118
      %p125 = scmp.eq.s32.totalorder %s26, 3
      %p126 = por %p124, %p125
      %p127 = scmp.ne.s32.totalorder %s118, %s119
      %p128 = scmp.eq.s32.totalorder %s26, 0
      %p129 = por %p127, %p128
      %p130 = scmp.ne.s32.totalorder %s118, %s119
      %p131 = scmp.eq.s32.totalorder %s27, 3
      %p132 = por %p130, %p131
      %p134 = scmp.ne.s32.totalorder %s119, %s133
      %p135 = scmp.eq.s32.totalorder %s27, 0
      %p136 = por %p134, %p135
      %s138 = sadd.s32 %s137, 1
      %p141 = scmp.eq.s32.totalorder %s21, 3
      %p142 = scmp.ne.s32.totalorder %s137, %s139
      %p143 = scmp.eq.s32.totalorder %s21, 0
      %p144 = por %p142, %p143
      %p145 = scmp.ne.s32.totalorder %s137, %s139
      %p146 = scmp.eq.s32.totalorder %s26, 3
      %p147 = por %p145, %p146
      %p148 = scmp.ne.s32.totalorder %s139, %s140
      %p149 = scmp.eq.s32.totalorder %s26, 0
      %p150 = por %p148, %p149
      %p151 = scmp.ne.s32.totalorder %s139, %s140
      %p152 = scmp.eq.s32.totalorder %s27, 3
      %p153 = por %p151, %p152
      %p155 = scmp.ne.s32.totalorder %s140, %s154
      %p156 = scmp.eq.s32.totalorder %s27, 0
      %p157 = por %p155, %p156
      %s159 = sadd.s32 %s158, 1
      %p162 = scmp.eq.s32.totalorder %s21, 3
      %p163 = scmp.ne.s32.totalorder %s158, %s160
      %p164 = scmp.eq.s32.totalorder %s21, 0
      %p165 = por %p163, %p164
      %p166 = scmp.ne.s32.totalorder %s158, %s160
      %p167 = scmp.eq.s32.totalorder %s26, 3
      %p168 = por %p166, %p167
      %p169 = scmp.ne.s32.totalorder %s160, %s161
      %p170 = scmp.eq.s32.totalorder %s26, 0
      %p171 = por %p169, %p170
      %p172 = scmp.ne.s32.totalorder %s160, %s161
      %p173 = scmp.eq.s32.totalorder %s27, 3
      %p174 = por %p172, %p173
      %p176 = scmp.ne.s32.totalorder %s161, %s175
      %p177 = scmp.eq.s32.totalorder %s27, 0
      %p178 = por %p176, %p177
      %s180 = sadd.s32 %s179, 1
      %p183 = scmp.eq.s32.totalorder %s21, 3
      %p184 = scmp.ne.s32.totalorder %s179, %s181
      %p185 = scmp.eq.s32.totalorder %s21, 0
      %p186 = por %p184, %p185
      %p187 = scmp.ne.s32.totalorder %s179, %s181
      %p188 = scmp.eq.s32.totalorder %s26, 3
      %p189 = por %p187, %p188
      %p190 = scmp.ne.s32.totalorder %s181, %s182
      %p191 = scmp.eq.s32.totalorder %s26, 0
      %p192 = por %p190, %p191
      %p193 = scmp.ne.s32.totalorder %s181, %s182
      %p194 = scmp.eq.s32.totalorder %s27, 3
      %p195 = por %p193, %p194
      %p197 = scmp.ne.s32.totalorder %s182, %s196
      %p198 = scmp.eq.s32.totalorder %s27, 0
      %p199 = por %p197, %p198
      %s201 = sadd.s32 %s200, 1
      %p204 = scmp.eq.s32.totalorder %s21, 3
      %p205 = scmp.ne.s32.totalorder %s200, %s202
      %p206 = scmp.eq.s32.totalorder %s21, 0
      %p207 = por %p205, %p206
      %p208 = scmp.ne.s32.totalorder %s200, %s202
      %p209 = scmp.eq.s32.totalorder %s26, 3
      %p210 = por %p208, %p209
      %p211 = scmp.ne.s32.totalorder %s202, %s203
      %p212 = scmp.eq.s32.totalorder %s26, 0
      %p213 = por %p211, %p212
      %p214 = scmp.ne.s32.totalorder %s202, %s203
      %p215 = scmp.eq.s32.totalorder %s27, 3
      %p216 = por %p214, %p215
      %p218 = scmp.ne.s32.totalorder %s203, %s217
      %p219 = scmp.eq.s32.totalorder %s27, 0
      %p220 = por %p218, %p219
      %s221 = ssub.s32 %s28, %s40
      %s222 = ssub.s32 %s29, %s36
      %s223 = sor.u32 %s221, %s222
      %p224 = scmp.eq.s32.totalorder %s223, 0
      %s226 = sadd.s32 %s225, 1
      %s227 = scalar_select %p224, %s225, %s226
      %p230 = pneg %p224
      %p231 = scmp.eq.s32.totalorder %s21, 3
      %p232 = por %p230, %p231
      %p233 = scmp.ne.s32.totalorder %s225, %s228
      %p234 = scmp.eq.s32.totalorder %s21, 0
      %p235 = por %p233, %p234
      %p236 = scmp.ne.s32.totalorder %s225, %s228
      %p237 = scmp.eq.s32.totalorder %s26, 3
      %p238 = por %p236, %p237
      %p239 = scmp.ne.s32.totalorder %s228, %s229
      %p240 = scmp.eq.s32.totalorder %s26, 0
      %p241 = por %p239, %p240
      %p242 = scmp.ne.s32.totalorder %s228, %s229
      %p243 = scmp.eq.s32.totalorder %s27, 3
      %p244 = por %p242, %p243
      %p246 = scmp.ne.s32.totalorder %s229, %s245
      %p247 = scmp.eq.s32.totalorder %s27, 0
      %p248 = por %p246, %p247
      %p249 = scmp.le.s32.totalorder 1, %s21
      %p250 = scmp.lt.s32.totalorder %s21, 5
      %p251 = pnand %p249, %p250
      %p252 = pneg %p251
      // Predicated region
      $region9: #{tpu_custom_call.1} parent=5 // pred_check
        _
      $region10: #{tpu_custom_call.1} parent=5 // pred_check_branch
        %254 = sbr.rel (%p251) target = $region12
      $region11: #{tpu_custom_call.1} parent=5 // pred_region
        %s255 = ssub.s32 %s21, 1
        // Predicated region
        $region13: #{tpu_custom_call.1} parent=11 // pred_check
          %p256 = pneg %p108
        $region14: #{tpu_custom_call.1} parent=11 // pred_check_branch
          %258 = sbr.rel (%p256) target = $region16
        $region15: #{tpu_custom_call.1} parent=11 // pred_region
          %s260 = ssub.s32 64, 64
          %261 = vsyncadd [#allocation8], %s260
          %s263 = sshll.u32 [#allocation7], 4
          %s264 = int_to_ptr.vmem [resolvable:$true] %s263
          %266 = dma.hbm_to_vmem [thread:$0]  %s2, 64, %s264, [#allocation8]
        $region16: #{tpu_custom_call.1} parent=11 // pred_fallthru
          _
        // Predicated region
        $region17: #{tpu_custom_call.1} parent=11 // pred_check
          %p267 = pneg %p129
        $region18: #{tpu_custom_call.1} parent=11 // pred_check_branch
          %269 = sbr.rel (%p267) target = $region20
        $region19: #{tpu_custom_call.1} parent=11 // pred_region
          _
        $region20: #{tpu_custom_call.1} parent=11 // pred_fallthru
          _
        // Predicated region
        $region21: #{tpu_custom_call.1} parent=11 // pred_check
          %p270 = pneg %p150
        $region22: #{tpu_custom_call.1} parent=11 // pred_check_branch
          %272 = sbr.rel (%p270) target = $region24
        $region23: #{tpu_custom_call.1} parent=11 // pred_region
          _
        $region24: #{tpu_custom_call.1} parent=11 // pred_fallthru
          _
        // Predicated region
        $region25: #{tpu_custom_call.1} parent=11 // pred_check
          %p273 = pneg %p171
        $region26: #{tpu_custom_call.1} parent=11 // pred_check_branch
          %275 = sbr.rel (%p273) target = $region28
        $region27: #{tpu_custom_call.1} parent=11 // pred_region
          _
        $region28: #{tpu_custom_call.1} parent=11 // pred_fallthru
          _
        // Predicated region
        $region29: #{tpu_custom_call.1} parent=11 // pred_check
          %p276 = pneg %p192
        $region30: #{tpu_custom_call.1} parent=11 // pred_check_branch
          %278 = sbr.rel (%p276) target = $region32
        $region31: #{tpu_custom_call.1} parent=11 // pred_region
          _
        $region32: #{tpu_custom_call.1} parent=11 // pred_fallthru
          _
        // Predicated region
        $region33: #{tpu_custom_call.1} parent=11 // pred_check
          %p279 = pneg %p213
        $region34: #{tpu_custom_call.1} parent=11 // pred_check_branch
          %281 = sbr.rel (%p279) target = $region36
        $region35: #{tpu_custom_call.1} parent=11 // pred_region
          _
        $region36: #{tpu_custom_call.1} parent=11 // pred_fallthru
          _
      $region12: #{tpu_custom_call.1} parent=5 // pred_fallthru
        _
      %p282 = scmp.lt.s32.totalorder %s21, 4
      // Predicated region
      $region37: #{tpu_custom_call.1} parent=5 // pred_check
        %p283 = pneg %p282
      $region38: #{tpu_custom_call.1} parent=5 // pred_check_branch
        %285 = sbr.rel (%p283) target = $region40
      $region39: #{tpu_custom_call.1} parent=5 // pred_region
        // Predicated region
        $region41: #{tpu_custom_call.1} parent=39 // pred_check
          %p286 = pneg %p53
        $region42: #{tpu_custom_call.1} parent=39 // pred_check_branch
          %288 = sbr.rel (%p286) target = $region44
        $region43: #{tpu_custom_call.1} parent=39 // pred_region
          %p289 = scmp.lt.s32.totalorder %s28, 1
          %s290 = scalar_select %p289, %s28, 1
          %s291 = smul.addr %s290, 2
          %s292 = smul.addr %s291, 8
          %s293 = scalar_lea.vmem %s0, %s292
        $region44: #{tpu_custom_call.1} parent=39 // pred_fallthru
          _
        // Predicated region
        $region45: #{tpu_custom_call.1} parent=39 // pred_check
          %p294 = pneg %p81
        $region46: #{tpu_custom_call.1} parent=39 // pred_check_branch
          %296 = sbr.rel (%p294) target = $region48
        $region47: #{tpu_custom_call.1} parent=39 // pred_region
          %s297 = sand.u32 %s71, 1
          %s298 = scalar_lea.sflag [#allocation5], %s297
          %s299 = sand.u32 %s71, 1
          %s300 = smul.addr %s299, 8
          %s301 = scalar_lea.vmem [#allocation4], %s300
          %s303 = ssub.s32 128, 128
          %304 = vsyncadd %s298, %s303
          %s305 = smul.addr %s28, 2
          %s306 = sadd.s32 %s29, %s305
          %s307 = smul.addr %s306, 128
          %s308 = scalar_lea.hbm %s1, %s307
          %s310 = sshll.u32 %s301, 4
          %s311 = int_to_ptr.vmem [resolvable:$true] %s310
          %313 = dma.hbm_to_vmem [thread:$0]  %s308, 128, %s311, %s298
        $region48: #{tpu_custom_call.1} parent=39 // pred_fallthru
          _
      $region40: #{tpu_custom_call.1} parent=5 // pred_fallthru
        _
      %p314 = scmp.le.s32.totalorder 1, %s21
      %p315 = scmp.lt.s32.totalorder %s21, 5
      %p316 = pnand %p314, %p315
      %p317 = pneg %p316
      // Predicated region
      $region49: #{tpu_custom_call.1} parent=5 // pred_check
        _
      $region50: #{tpu_custom_call.1} parent=5 // pred_check_branch
        %319 = sbr.rel (%p316) target = $region52
      $region51: #{tpu_custom_call.1} parent=5 // pred_region
        %s320 = ssub.s32 %s21, 1
        %s321 = sand.u32 %s74, 1
        %s322 = scalar_lea.sflag [#allocation5], %s321
        %s323 = sand.u32 %s74, 1
        %s324 = smul.addr %s323, 8
        %s325 = scalar_lea.vmem [#allocation4], %s324
        // Predicated region
        $region53: #{tpu_custom_call.1} parent=51 // pred_check
          %p326 = pneg %p87
        $region54: #{tpu_custom_call.1} parent=51 // pred_check_branch
          %328 = sbr.rel (%p326) target = $region56
        $region55: #{tpu_custom_call.1} parent=51 // pred_region
          %329 = dma.done %s322, 128
        $region56: #{tpu_custom_call.1} parent=51 // pred_fallthru
          _
        // Predicated region
        $region57: #{tpu_custom_call.1} parent=51 // pred_check
          %p330 = pneg %p108
        $region58: #{tpu_custom_call.1} parent=51 // pred_check_branch
          %332 = sbr.rel (%p330) target = $region60
        $region59: #{tpu_custom_call.1} parent=51 // pred_region
          %333 = dma.done [#allocation8], 64
        $region60: #{tpu_custom_call.1} parent=51 // pred_fallthru
          _
        %p334 = scmp.lt.s32.totalorder %s30, 1
        %s335 = scalar_select %p334, %s30, 1
        %s336 = smul.addr %s335, 2
        %s337 = smul.addr %s336, 8
        %s338 = scalar_lea.vmem %s0, %s337
        %p339 = pneg %p59
        %p340 = pneg %p56
        %s341 = sand.u32 %s74, 1
        %s342 = scalar_lea.sflag [#allocation5], %s341
        %s343 = sand.u32 %s74, 1
        %s344 = smul.addr %s343, 8
        %s345 = scalar_lea.vmem [#allocation4], %s344
        %p346 = pneg %p87
        %p347 = pneg %p84
        %p348 = pneg %p108
        %p349 = pneg %p105
        %p350 = pneg %p129
        %p351 = pneg %p126
        %p352 = pneg %p150
        %p353 = pneg %p147
        %p354 = pneg %p171
        %p355 = pneg %p168
        %p356 = pneg %p192
        %p357 = pneg %p189
        %p358 = pneg %p213
        %p359 = pneg %p210
        %p360 = pneg %p241
        %p361 = pneg %p238
        %s362 = sand.u32 %s228, 1
        %s363 = scalar_lea.sflag [#allocation6], %s362
        %s364 = sand.u32 %s228, 1
        %s365 = smul.addr %s364, 8
        %s366 = scalar_lea.vmem [#allocation9], %s365
        %p367 = scmp.lt.s32.totalorder %s30, 1
        %s368 = scalar_select %p367, %s30, 1
        %s369 = smul.addr %s368, 2
        %s370 = smul.addr %s369, 8
        %s371 = scalar_lea.vmem %s0, %s370
        %p372 = scmp.eq.s32.totalorder %s31, 0
        // Predicated region
        $region61: #{tpu_custom_call.1} parent=51 // pred_check
          %p373 = pneg %p372
        $region62: #{tpu_custom_call.1} parent=51 // pred_check_branch
          %375 = sbr.rel (%p373) target = $region64
        $region63: #{tpu_custom_call.1} parent=51 // pred_region
          %v376 = vld [vmem:[%s371] sm:$0xff]
          %v377 = vld [vmem:[%s371 + $0x8] sm:$0xff]
          %v378 = vld [vmem:[%s4] sm:$0xff]
          %v379 = vld [vmem:[%s5] sm:$0xff]
          %381 = vset.pattern.permute.xlu0 0
          %382 = vperm.xlu0 %381, %v379
          %v383 = vpop.permute.xlu0 %382
          %vm385 = vcmask 64512
          %v387 = vsel %vm385, %v378, 0
          %389 = vmatprep.subr.mxu0 %v377
          %390 = vmatpush1.msra.mxu0 %v376
          %391 = vmatprep.subr.mxu0 0.0
          %392 = vmatpush1.msra.mxu0 0.0
          %393 = vmatprep.subr.mxu0 0.0
          %394 = vmatpush1.msra.mxu0 0.0
          %395 = vmatprep.subr.mxu0 0.0
          %396 = vmatpush1.msra.mxu0 0.0
          %397 = vmatprep.subr.mxu0 0.0
          %398 = vmatpush1.msra.mxu0 0.0
          %399 = vmatprep.subr.mxu0 0.0
          %400 = vmatpush1.msra.mxu0 0.0
          %401 = vmatprep.subr.mxu0 0.0
          %402 = vmatpush1.msra.mxu0 0.0
          %403 = vmatprep.subr.mxu0 0.0
          %404 = vmatpush1.msra.mxu0 0.0
          %405 = vmatprep.subr.mxu0 0.0
          %406 = vmatpush1.msra.mxu0 0.0
          %407 = vmatprep.subr.mxu0 0.0
          %408 = vmatpush1.msra.mxu0 0.0
          %409 = vmatprep.subr.mxu0 0.0
          %410 = vmatpush1.msra.mxu0 0.0
          %411 = vmatprep.subr.mxu0 0.0
          %412 = vmatpush1.msra.mxu0 0.0
          %413 = vmatprep.subr.mxu0 0.0
          %414 = vmatpush1.msra.mxu0 0.0
          %415 = vmatprep.subr.mxu0 0.0
          %416 = vmatpush1.msra.mxu0 0.0
          %417 = vmatprep.subr.mxu0 0.0
          %418 = vmatpush1.msra.mxu0 0.0
          %419 = vmatprep.subr.mxu0 0.0
          %420 = vmatpush1.msra.mxu0 0.0
          %421 = vmatprep.subr.mxu0 0.0
          %422 = vmatpush1.msra.mxu0 0.0
          %423 = vmatprep.subr.mxu0 0.0
          %424 = vmatpush1.msra.mxu0 0.0
          %425 = vmatprep.subr.mxu0 0.0
          %426 = vmatpush1.msra.mxu0 0.0
          %427 = vmatprep.subr.mxu0 0.0
          %428 = vmatpush1.msra.mxu0 0.0
          %429 = vmatprep.subr.mxu0 0.0
          %430 = vmatpush1.msra.mxu0 0.0
          %431 = vmatprep.subr.mxu0 0.0
          %432 = vmatpush1.msra.mxu0 0.0
          %433 = vmatprep.subr.mxu0 0.0
          %434 = vmatpush1.msra.mxu0 0.0
          %435 = vmatprep.subr.mxu0 0.0
          %436 = vmatpush1.msra.mxu0 0.0
          %437 = vmatprep.subr.mxu0 0.0
          %438 = vmatpush1.msra.mxu0 0.0
          %439 = vmatprep.subr.mxu0 0.0
          %440 = vmatpush1.msra.mxu0 0.0
          %441 = vmatprep.subr.mxu0 0.0
          %442 = vmatpush1.msra.mxu0 0.0
          %443 = vmatprep.subr.mxu0 0.0
          %444 = vmatpush1.msra.mxu0 0.0
          %445 = vmatprep.subr.mxu0 0.0
          %446 = vmatpush1.msra.mxu0 0.0
          %447 = vmatprep.subr.mxu0 0.0
          %448 = vmatpush1.msra.mxu0 0.0
          %449 = vmatprep.subr.mxu0 0.0
          %450 = vmatpush1.msra.mxu0 0.0
          %451 = vmatprep.subr.mxu0 0.0
          %452 = vmatpush1.msra.mxu0 0.0
          %453 = vmatprep.mubr.f32.mxu0 0.0
          %454 = vmatmul.mubr.f32.gmra.mrb[0].mxu0 %v387
          %v455 = vpop.f32.mrb[0].mxu0
          %v456 = vadd.f32 %v383, %v455
          %v457 = vpop.f32.mrb[0].mxu0
          %v458 = vadd.f32 %v383, %v457
          %459 = vdwg.mxu0
          %461 = vrot.lane.b32.xlu0 %v456, 64
          %v462 = vpop.permute.xlu0 %461
          %v464 = vmax.f32 %v456, %v462
          %v465 = vmax.f32 %v464, %v458
          %467 = vrot.lane.b32.xlu0 %v458, 64
          %v468 = vpop.permute.xlu0 %467
          %v470 = vmax.f32 %v465, %v468
          %vm471 = vcmask 519168
          %472 = vst.msk [vmem:[#allocation2] sm:$0xf] %vm471, %v470
          %vm473 = vcmask 523268
          %474 = vst.msk [vmem:[#allocation3 - $0x4] sm:$0xf0] %vm473, %v470
        $region64: #{tpu_custom_call.1} parent=51 // pred_fallthru
          _
        %v475 = vld [vmem:[%s325] sm:$0xff]
        %v476 = vld [vmem:[#allocation7] sm:$0xf]
        %v477 = vld [vmem:[%s3] sm:$0xf]
        %479 = vset.pattern.permute.xlu0 0
        %480 = vperm.xlu0 %479, %v477
        %v481 = vpop.permute.xlu0 %480
        %vm483 = vcmask 64512
        %v485 = vsel %vm483, %v476, 0
        %487 = vmatprep.subr.mxu0 0.0
        %488 = vmatpush1.msra.mxu0 %v475
        %489 = vmatprep.subr.mxu0 0.0
        %490 = vmatpush1.msra.mxu0 0.0
        %491 = vmatprep.subr.mxu0 0.0
        %492 = vmatpush1.msra.mxu0 0.0
        %493 = vmatprep.subr.mxu0 0.0
        %494 = vmatpush1.msra.mxu0 0.0
        %495 = vmatprep.subr.mxu0 0.0
        %496 = vmatpush1.msra.mxu0 0.0
        %497 = vmatprep.subr.mxu0 0.0
        %498 = vmatpush1.msra.mxu0 0.0
        %499 = vmatprep.subr.mxu0 0.0
        %500 = vmatpush1.msra.mxu0 0.0
        %501 = vmatprep.subr.mxu0 0.0
        %502 = vmatpush1.msra.mxu0 0.0
        %503 = vmatprep.subr.mxu0 0.0
        %504 = vmatpush1.msra.mxu0 0.0
        %505 = vmatprep.subr.mxu0 0.0
        %506 = vmatpush1.msra.mxu0 0.0
        %507 = vmatprep.subr.mxu0 0.0
        %508 = vmatpush1.msra.mxu0 0.0
        %509 = vmatprep.subr.mxu0 0.0
        %510 = vmatpush1.msra.mxu0 0.0
        %511 = vmatprep.subr.mxu0 0.0
        %512 = vmatpush1.msra.mxu0 0.0
        %513 = vmatprep.subr.mxu0 0.0
        %514 = vmatpush1.msra.mxu0 0.0
        %515 = vmatprep.subr.mxu0 0.0
        %516 = vmatpush1.msra.mxu0 0.0
        %517 = vmatprep.subr.mxu0 0.0
        %518 = vmatpush1.msra.mxu0 0.0
        %519 = vmatprep.subr.mxu0 0.0
        %520 = vmatpush1.msra.mxu0 0.0
        %521 = vmatprep.subr.mxu0 0.0
        %522 = vmatpush1.msra.mxu0 0.0
        %523 = vmatprep.subr.mxu0 0.0
        %524 = vmatpush1.msra.mxu0 0.0
        %525 = vmatprep.subr.mxu0 0.0
        %526 = vmatpush1.msra.mxu0 0.0
        %527 = vmatprep.subr.mxu0 0.0
        %528 = vmatpush1.msra.mxu0 0.0
        %529 = vmatprep.subr.mxu0 0.0
        %530 = vmatpush1.msra.mxu0 0.0
        %531 = vmatprep.subr.mxu0 0.0
        %532 = vmatpush1.msra.mxu0 0.0
        %533 = vmatprep.subr.mxu0 0.0
        %534 = vmatpush1.msra.mxu0 0.0
        %535 = vmatprep.subr.mxu0 0.0
        %536 = vmatpush1.msra.mxu0 0.0
        %537 = vmatprep.subr.mxu0 0.0
        %538 = vmatpush1.msra.mxu0 0.0
        %539 = vmatprep.subr.mxu0 0.0
        %540 = vmatpush1.msra.mxu0 0.0
        %541 = vmatprep.subr.mxu0 0.0
        %542 = vmatpush1.msra.mxu0 0.0
        %543 = vmatprep.subr.mxu0 0.0
        %544 = vmatpush1.msra.mxu0 0.0
        %545 = vmatprep.subr.mxu0 0.0
        %546 = vmatpush1.msra.mxu0 0.0
        %547 = vmatprep.subr.mxu0 0.0
        %548 = vmatpush1.msra.mxu0 0.0
        %549 = vmatprep.subr.mxu0 0.0
        %550 = vmatpush1.msra.mxu0 0.0
        %551 = vmatprep.mubr.f32.mxu0 0.0
        %552 = vmatmul.mubr.f32.gmra.mrb[0].mxu0 %v485
        %v553 = vpop.f32.mrb[0].mxu0
        %v554 = vadd.f32 %v481, %v553
        %v555 = vpop.f32.mrb[0].mxu0
        %556 = vdwg.mxu0
        %v557 = vld [vmem:[#allocation3] sm:$0xf]
        %v558 = vld [vmem:[#allocation2] sm:$0xf]
        %559 = vxpose.xlu0.b32.start [1/16] %v557, 128
        %560 = vxpose.xlu0.b32.cont [2/16] 0.0, 128
        %561 = vxpose.xlu0.b32.cont [3/16] 0.0, 128
        %562 = vxpose.xlu0.b32.cont [4/16] 0.0, 128
        %563 = vxpose.xlu0.b32.cont [5/16] 0.0, 128
        %564 = vxpose.xlu0.b32.cont [6/16] 0.0, 128
        %565 = vxpose.xlu0.b32.cont [7/16] 0.0, 128
        %566 = vxpose.xlu0.b32.cont [8/16] 0.0, 128
        %567 = vxpose.xlu0.b32.cont [9/16] 0.0, 128
        %568 = vxpose.xlu0.b32.cont [10/16] 0.0, 128
        %569 = vxpose.xlu0.b32.cont [11/16] 0.0, 128
        %570 = vxpose.xlu0.b32.cont [12/16] 0.0, 128
        %571 = vxpose.xlu0.b32.cont [13/16] 0.0, 128
        %572 = vxpose.xlu0.b32.cont [14/16] 0.0, 128
        %573 = vxpose.xlu0.b32.cont [15/16] 0.0, 128
        %574 = vxpose.xlu0.b32.end [16/16] 0.0, 128
        %v575 = vpop.trf.xlu0
        %v576 = vpop.trf.xlu0
        %v577 = vpop.trf.xlu0
        %v578 = vpop.trf.xlu0
        %v579 = vpop.trf.xlu0
        %v580 = vpop.trf.xlu0
        %v581 = vpop.trf.xlu0
        %v582 = vpop.trf.xlu0
        %v583 = vpop.trf.xlu0
        %v584 = vpop.trf.xlu0
        %v585 = vpop.trf.xlu0
        %v586 = vpop.trf.xlu0
        %v587 = vpop.trf.xlu0
        %v588 = vpop.trf.xlu0
        %v589 = vpop.trf.xlu0
        %v590 = vpop.trf.xlu0
        %vm591 = vcmask 31744
        %v593 = vsel %vm591, %v575, 0
        %v596 = vsel %vm591, %v576, 0
        %v599 = vsel %vm591, %v577, 0
        %v602 = vsel %vm591, %v578, 0
        %v605 = vsel %vm591, %v579, 0
        %v608 = vsel %vm591, %v580, 0
        %v611 = vsel %vm591, %v581, 0
        %v614 = vsel %vm591, %v582, 0
        %vm616 = vcmask 1043456
        %v618 = vsel %vm616, %v554, 0
        %620 = vmatprep.subr.mxu0 0.0
        %621 = vmatpush1.msra.mxu0 %v618
        %622 = vmatprep.subr.mxu0 0.0
        %623 = vmatpush1.msra.mxu0 0.0
        %624 = vmatprep.subr.mxu0 0.0
        %625 = vmatpush1.msra.mxu0 0.0
        %626 = vmatprep.subr.mxu0 0.0
        %627 = vmatpush1.msra.mxu0 0.0
        %628 = vmatprep.subr.mxu0 0.0
        %629 = vmatpush1.msra.mxu0 0.0
        %630 = vmatprep.subr.mxu0 0.0
        %631 = vmatpush1.msra.mxu0 0.0
        %632 = vmatprep.subr.mxu0 0.0
        %633 = vmatpush1.msra.mxu0 0.0
        %634 = vmatprep.subr.mxu0 0.0
        %635 = vmatpush1.msra.mxu0 0.0
        %636 = vmatprep.subr.mxu0 0.0
        %637 = vmatpush1.msra.mxu0 0.0
        %638 = vmatprep.subr.mxu0 0.0
        %639 = vmatpush1.msra.mxu0 0.0
        %640 = vmatprep.subr.mxu0 0.0
        %641 = vmatpush1.msra.mxu0 0.0
        %642 = vmatprep.subr.mxu0 0.0
        %643 = vmatpush1.msra.mxu0 0.0
        %644 = vmatprep.subr.mxu0 0.0
        %645 = vmatpush1.msra.mxu0 0.0
        %646 = vmatprep.subr.mxu0 0.0
        %647 = vmatpush1.msra.mxu0 0.0
        %648 = vmatprep.subr.mxu0 0.0
        %649 = vmatpush1.msra.mxu0 0.0
        %650 = vmatprep.subr.mxu0 0.0
        %651 = vmatpush1.msra.mxu0 0.0
        %652 = vmatprep.subr.mxu0 0.0
        %653 = vmatpush1.msra.mxu0 0.0
        %654 = vmatprep.subr.mxu0 0.0
        %655 = vmatpush1.msra.mxu0 0.0
        %656 = vmatprep.subr.mxu0 0.0
        %657 = vmatpush1.msra.mxu0 0.0
        %658 = vmatprep.subr.mxu0 0.0
        %659 = vmatpush1.msra.mxu0 0.0
        %660 = vmatprep.subr.mxu0 0.0
        %661 = vmatpush1.msra.mxu0 0.0
        %662 = vmatprep.subr.mxu0 0.0
        %663 = vmatpush1.msra.mxu0 0.0
        %664 = vmatprep.subr.mxu0 0.0
        %665 = vmatpush1.msra.mxu0 0.0
        %666 = vmatprep.subr.mxu0 0.0
        %667 = vmatpush1.msra.mxu0 0.0
        %668 = vmatprep.subr.mxu0 0.0
        %669 = vmatpush1.msra.mxu0 0.0
        %670 = vmatprep.subr.mxu0 0.0
        %671 = vmatpush1.msra.mxu0 0.0
        %672 = vmatprep.subr.mxu0 0.0
        %673 = vmatpush1.msra.mxu0 0.0
        %674 = vmatprep.subr.mxu0 0.0
        %675 = vmatpush1.msra.mxu0 0.0
        %676 = vmatprep.subr.mxu0 0.0
        %677 = vmatpush1.msra.mxu0 0.0
        %678 = vmatprep.subr.mxu0 0.0
        %679 = vmatpush1.msra.mxu0 0.0
        %680 = vmatprep.subr.mxu0 0.0
        %681 = vmatpush1.msra.mxu0 0.0
        %682 = vmatprep.subr.mxu0 0.0
        %683 = vmatpush1.msra.mxu0 0.0
        %684 = vmatprep.mubr.f32.mxu0 0.0
        %685 = vmatmul.mubr.f32.gmra.mrb[0].mxu0 %v593
        %v686 = vpop.f32.mrb[0].mxu0
        %v687 = vadd.f32 0.0, %v686
        %v688 = vpop.f32.mrb[0].mxu0
        %689 = vmatprep.mubr.f32.mxu0 0.0
        %690 = vmatmul.mubr.f32.gmra.mrb[0].mxu0 %v596
        %v691 = vpop.f32.mrb[0].mxu0
        %v692 = vadd.f32 0.0, %v691
        %v693 = vpop.f32.mrb[0].mxu0
        %694 = vmatprep.mubr.f32.mxu0 0.0
        %695 = vmatmul.mubr.f32.gmra.mrb[0].mxu0 %v599
        %v696 = vpop.f32.mrb[0].mxu0
        %v697 = vadd.f32 0.0, %v696
        %v698 = vpop.f32.mrb[0].mxu0
        %699 = vmatprep.mubr.f32.mxu0 0.0
        %700 = vmatmul.mubr.f32.gmra.mrb[0].mxu0 %v602
        %v701 = vpop.f32.mrb[0].mxu0
        %v702 = vadd.f32 0.0, %v701
        %v703 = vpop.f32.mrb[0].mxu0
        %704 = vmatprep.mubr.f32.mxu0 0.0
        %705 = vmatmul.mubr.f32.gmra.mrb[0].mxu0 %v605
        %v706 = vpop.f32.mrb[0].mxu0
        %v707 = vadd.f32 0.0, %v706
        %v708 = vpop.f32.mrb[0].mxu0
        %709 = vmatprep.mubr.f32.mxu0 0.0
        %710 = vmatmul.mubr.f32.gmra.mrb[0].mxu0 %v608
        %v711 = vpop.f32.mrb[0].mxu0
        %v712 = vadd.f32 0.0, %v711
        %v713 = vpop.f32.mrb[0].mxu0
        %714 = vmatprep.mubr.f32.mxu0 0.0
        %715 = vmatmul.mubr.f32.gmra.mrb[0].mxu0 %v611
        %v716 = vpop.f32.mrb[0].mxu0
        %v717 = vadd.f32 0.0, %v716
        %v718 = vpop.f32.mrb[0].mxu0
        %719 = vmatprep.mubr.f32.mxu0 0.0
        %720 = vmatmul.mubr.f32.gmra.mrb[0].mxu0 %v614
        %v721 = vpop.f32.mrb[0].mxu0
        %v722 = vadd.f32 0.0, %v721
        %v723 = vpop.f32.mrb[0].mxu0
        %724 = vdwg.mxu0
        %v725 = vmax.f32 %v687, %v707
        %v726 = vmax.f32 %v692, %v712
        %v727 = vmax.f32 %v697, %v717
        %v728 = vmax.f32 %v702, %v722
        %v729 = vmax.f32 %v725, %v726
        %v730 = vmax.f32 %v727, %v728
        %v731 = vmax.f32 %v729, %v730
        %v732 = vrot.slane %v731, 4
        %v733 = vmax.f32 %v731, %v732
        %v734 = vrot.slane %v733, 2
        %v735 = vmax.f32 %v733, %v734
        %v736 = vrot.slane %v735, 1
        %v737 = vmax.f32 %v735, %v736
        %v738 = vsub.f32 %v687, %v737
        %v739 = vsub.f32 %v692, %v737
        %v740 = vsub.f32 %v697, %v737
        %v741 = vsub.f32 %v702, %v737
        %v742 = vsub.f32 %v707, %v737
        %v743 = vsub.f32 %v712, %v737
        %v744 = vsub.f32 %v717, %v737
        %v745 = vsub.f32 %v722, %v737
        %v746 = vmul.f32 %v738, 1.442695
        %v747 = vpow.pop %v746
        %v748 = vmul.f32 %v739, 1.442695
        %v749 = vpow.pop %v748
        %v750 = vmul.f32 %v740, 1.442695
        %v751 = vpow.pop %v750
        %v752 = vmul.f32 %v741, 1.442695
        %v753 = vpow.pop %v752
        %v754 = vmul.f32 %v742, 1.442695
        %v755 = vpow.pop %v754
        %v756 = vmul.f32 %v743, 1.442695
        %v757 = vpow.pop %v756
        %v758 = vmul.f32 %v744, 1.442695
        %v759 = vpow.pop %v758
        %v760 = vmul.f32 %v745, 1.442695
        %v761 = vpow.pop %v760
        %v762 = vadd.f32 %v747, %v749
        %v763 = vadd.f32 %v762, %v751
        %v764 = vadd.f32 %v763, %v753
        %v765 = vadd.f32 %v764, %v755
        %v766 = vadd.f32 %v765, %v757
        %v767 = vadd.f32 %v766, %v759
        %v768 = vadd.f32 %v767, %v761
        %v769 = vrot.slane %v768, 4
        %v770 = vadd.f32 %v768, %v769
        %v771 = vrot.slane %v770, 2
        %v772 = vadd.f32 %v770, %v771
        %v773 = vrot.slane %v772, 1
        %v774 = vadd.f32 %v772, %v773
        %v775 = vrcp.pop %v774
        %v776 = vmul.f32 %v747, %v775
        %v777 = vmul.f32 %v749, %v775
        %v778 = vmul.f32 %v751, %v775
        %v779 = vmul.f32 %v753, %v775
        %v780 = vmul.f32 %v755, %v775
        %v781 = vmul.f32 %v757, %v775
        %v782 = vmul.f32 %v759, %v775
        %v783 = vmul.f32 %v761, %v775
        %vm784 = vcmask 523264
        %v786 = vsel %vm784, %v558, 0
        %788 = vmatprep.subr.mxu0 0.0
        %789 = vmatpush1.msra.mxu0 %v776
        %790 = vmatprep.subr.mxu0 0.0
        %791 = vmatpush1.msra.mxu0 %v777
        %792 = vmatprep.subr.mxu0 0.0
        %793 = vmatpush1.msra.mxu0 %v778
        %794 = vmatprep.subr.mxu0 0.0
        %795 = vmatpush1.msra.mxu0 %v779
        %796 = vmatprep.subr.mxu0 0.0
        %797 = vmatpush1.msra.mxu0 %v780
        %798 = vmatprep.subr.mxu0 0.0
        %799 = vmatpush1.msra.mxu0 %v781
        %800 = vmatprep.subr.mxu0 0.0
        %801 = vmatpush1.msra.mxu0 %v782
        %802 = vmatprep.subr.mxu0 0.0
        %803 = vmatpush1.msra.mxu0 %v783
        %804 = vmatprep.subr.mxu0 0.0
        %805 = vmatpush1.msra.mxu0 0.0
        %806 = vmatprep.subr.mxu0 0.0
        %807 = vmatpush1.msra.mxu0 0.0
        %808 = vmatprep.subr.mxu0 0.0
        %809 = vmatpush1.msra.mxu0 0.0
        %810 = vmatprep.subr.mxu0 0.0
        %811 = vmatpush1.msra.mxu0 0.0
        %812 = vmatprep.subr.mxu0 0.0
        %813 = vmatpush1.msra.mxu0 0.0
        %814 = vmatprep.subr.mxu0 0.0
        %815 = vmatpush1.msra.mxu0 0.0
        %816 = vmatprep.subr.mxu0 0.0
        %817 = vmatpush1.msra.mxu0 0.0
        %818 = vmatprep.subr.mxu0 0.0
        %819 = vmatpush1.msra.mxu0 0.0
        %820 = vmatprep.subr.mxu0 0.0
        %821 = vmatpush1.msra.mxu0 0.0
        %822 = vmatprep.subr.mxu0 0.0
        %823 = vmatpush1.msra.mxu0 0.0
        %824 = vmatprep.subr.mxu0 0.0
        %825 = vmatpush1.msra.mxu0 0.0
        %826 = vmatprep.subr.mxu0 0.0
        %827 = vmatpush1.msra.mxu0 0.0
        %828 = vmatprep.subr.mxu0 0.0
        %829 = vmatpush1.msra.mxu0 0.0
        %830 = vmatprep.subr.mxu0 0.0
        %831 = vmatpush1.msra.mxu0 0.0
        %832 = vmatprep.subr.mxu0 0.0
        %833 = vmatpush1.msra.mxu0 0.0
        %834 = vmatprep.subr.mxu0 0.0
        %835 = vmatpush1.msra.mxu0 0.0
        %836 = vmatprep.subr.mxu0 0.0
        %837 = vmatpush1.msra.mxu0 0.0
        %838 = vmatprep.subr.mxu0 0.0
        %839 = vmatpush1.msra.mxu0 0.0
        %840 = vmatprep.subr.mxu0 0.0
        %841 = vmatpush1.msra.mxu0 0.0
        %842 = vmatprep.subr.mxu0 0.0
        %843 = vmatpush1.msra.mxu0 0.0
        %844 = vmatprep.subr.mxu0 0.0
        %845 = vmatpush1.msra.mxu0 0.0
        %846 = vmatprep.subr.mxu0 0.0
        %847 = vmatpush1.msra.mxu0 0.0
        %848 = vmatprep.subr.mxu0 0.0
        %849 = vmatpush1.msra.mxu0 0.0
        %850 = vmatprep.subr.mxu0 0.0
        %851 = vmatpush1.msra.mxu0 0.0
        %852 = vmatprep.mubr.f32.mxu0 0.0
        %853 = vmatmul.mubr.f32.gmra.mrb[0].mxu0 %v786
        %v854 = vpop.f32.mrb[0].mxu0
        %v855 = vadd.f32 0.0, %v854
        %v856 = vpop.f32.mrb[0].mxu0
        %857 = vdwg.mxu0
        %v858 = vld [vmem:[%s6] sm:$0xff]
        %v859 = vld [vmem:[%s7] sm:$0xff]
        %861 = vset.pattern.permute.xlu0 0
        %862 = vperm.xlu0 %861, %v859
        %v863 = vpop.permute.xlu0 %862
        %v866 = vsel %vm591, %v858, 0
        %v869 = vsel %vm616, %v855, 0
        %871 = vmatprep.subr.mxu0 0.0
        %872 = vmatpush1.msra.mxu0 %v869
        %873 = vmatprep.subr.mxu0 0.0
        %874 = vmatpush1.msra.mxu0 0.0
        %875 = vmatprep.subr.mxu0 0.0
        %876 = vmatpush1.msra.mxu0 0.0
        %877 = vmatprep.subr.mxu0 0.0
        %878 = vmatpush1.msra.mxu0 0.0
        %879 = vmatprep.subr.mxu0 0.0
        %880 = vmatpush1.msra.mxu0 0.0
        %881 = vmatprep.subr.mxu0 0.0
        %882 = vmatpush1.msra.mxu0 0.0
        %883 = vmatprep.subr.mxu0 0.0
        %884 = vmatpush1.msra.mxu0 0.0
        %885 = vmatprep.subr.mxu0 0.0
        %886 = vmatpush1.msra.mxu0 0.0
        %887 = vmatprep.subr.mxu0 0.0
        %888 = vmatpush1.msra.mxu0 0.0
        %889 = vmatprep.subr.mxu0 0.0
        %890 = vmatpush1.msra.mxu0 0.0
        %891 = vmatprep.subr.mxu0 0.0
        %892 = vmatpush1.msra.mxu0 0.0
        %893 = vmatprep.subr.mxu0 0.0
        %894 = vmatpush1.msra.mxu0 0.0
        %895 = vmatprep.subr.mxu0 0.0
        %896 = vmatpush1.msra.mxu0 0.0
        %897 = vmatprep.subr.mxu0 0.0
        %898 = vmatpush1.msra.mxu0 0.0
        %899 = vmatprep.subr.mxu0 0.0
        %900 = vmatpush1.msra.mxu0 0.0
        %901 = vmatprep.subr.mxu0 0.0
        %902 = vmatpush1.msra.mxu0 0.0
        %903 = vmatprep.subr.mxu0 0.0
        %904 = vmatpush1.msra.mxu0 0.0
        %905 = vmatprep.subr.mxu0 0.0
        %906 = vmatpush1.msra.mxu0 0.0
        %907 = vmatprep.subr.mxu0 0.0
        %908 = vmatpush1.msra.mxu0 0.0
        %909 = vmatprep.subr.mxu0 0.0
        %910 = vmatpush1.msra.mxu0 0.0
        %911 = vmatprep.subr.mxu0 0.0
        %912 = vmatpush1.msra.mxu0 0.0
        %913 = vmatprep.subr.mxu0 0.0
        %914 = vmatpush1.msra.mxu0 0.0
        %915 = vmatprep.subr.mxu0 0.0
        %916 = vmatpush1.msra.mxu0 0.0
        %917 = vmatprep.subr.mxu0 0.0
        %918 = vmatpush1.msra.mxu0 0.0
        %919 = vmatprep.subr.mxu0 0.0
        %920 = vmatpush1.msra.mxu0 0.0
        %921 = vmatprep.subr.mxu0 0.0
        %922 = vmatpush1.msra.mxu0 0.0
        %923 = vmatprep.subr.mxu0 0.0
        %924 = vmatpush1.msra.mxu0 0.0
        %925 = vmatprep.subr.mxu0 0.0
        %926 = vmatpush1.msra.mxu0 0.0
        %927 = vmatprep.subr.mxu0 0.0
        %928 = vmatpush1.msra.mxu0 0.0
        %929 = vmatprep.subr.mxu0 0.0
        %930 = vmatpush1.msra.mxu0 0.0
        %931 = vmatprep.subr.mxu0 0.0
        %932 = vmatpush1.msra.mxu0 0.0
        %933 = vmatprep.subr.mxu0 0.0
        %934 = vmatpush1.msra.mxu0 0.0
        %935 = vmatprep.mubr.f32.mxu0 0.0
        %936 = vmatmul.mubr.f32.gmra.mrb[0].mxu0 %v866
        %v937 = vpop.f32.mrb[0].mxu0
        %v938 = vadd.f32 %v863, %v937
        %v939 = vpop.f32.mrb[0].mxu0
        %940 = vdwg.mxu0
        %v941 = vadd.f32 %v938, %v475
        %942 = vst [vmem:[%s366] sm:$0xff] %v941
        %s943 = sand.u32 %s228, 1
        %s944 = scalar_lea.sflag [#allocation6], %s943
        %s945 = sand.u32 %s228, 1
        %s946 = smul.addr %s945, 8
        %s947 = scalar_lea.vmem [#allocation9], %s946
        // Predicated region
        $region65: #{tpu_custom_call.1} parent=51 // pred_check
          %p948 = pneg %p238
        $region66: #{tpu_custom_call.1} parent=51 // pred_check_branch
          %950 = sbr.rel (%p948) target = $region68
        $region67: #{tpu_custom_call.1} parent=51 // pred_region
          %s952 = ssub.s32 128, 128
          %953 = vsyncadd %s944, %s952
          %s954 = smul.addr %s30, 2
          %s955 = sadd.s32 %s31, %s954
          %s956 = smul.addr %s955, 128
          %s957 = scalar_lea.hbm %s8, %s956
          %s959 = sshll.u32 %s947, 4
          %s960 = int_to_ptr.vmem [resolvable:$true] %s959
          %962 = dma.vmem_to_hbm [thread:$0]  %s960, 128, %s957, %s944
        $region68: #{tpu_custom_call.1} parent=51 // pred_fallthru
          _
      $region52: #{tpu_custom_call.1} parent=5 // pred_fallthru
        _
      %p963 = scmp.le.s32.totalorder 2, %s21
      // Predicated region
      $region69: #{tpu_custom_call.1} parent=5 // pred_check
        %p964 = pneg %p963
      $region70: #{tpu_custom_call.1} parent=5 // pred_check_branch
        %966 = sbr.rel (%p964) target = $region72
      $region71: #{tpu_custom_call.1} parent=5 // pred_region
        %s967 = ssub.s32 %s21, 2
        // Predicated region
        $region73: #{tpu_custom_call.1} parent=71 // pred_check
          %p968 = pneg %p244
        $region74: #{tpu_custom_call.1} parent=71 // pred_check_branch
          %970 = sbr.rel (%p968) target = $region76
        $region75: #{tpu_custom_call.1} parent=71 // pred_region
          %s971 = sand.u32 %s229, 1
          %s972 = scalar_lea.sflag [#allocation6], %s971
          %s973 = sand.u32 %s229, 1
          %s974 = smul.addr %s973, 8
          %s975 = scalar_lea.vmem [#allocation9], %s974
          %976 = dma.done %s972, 128
        $region76: #{tpu_custom_call.1} parent=71 // pred_fallthru
          _
      $region72: #{tpu_custom_call.1} parent=5 // pred_fallthru
        _
    $region6: #{tpu_custom_call.1} parent=1 // loop_footer
      %s25 = sadd.s32 1, %s21
    $region7: #{tpu_custom_call.1} parent=1 // loop_footer_branch
      %20 = sbr.rel target = $region3
    $region8: #{tpu_custom_call.1} parent=1 // loop_exit
      _
    %977 = vsyncpa [#allocation5], 1
    %s978 = scalar_lea.sflag [#allocation5], 1
    %979 = vsyncpa %s978, 1
    %980 = vsyncpa [#allocation8], 1
    %981 = vsyncpa [#allocation6], 1
    %s982 = scalar_lea.sflag [#allocation6], 1
    %983 = vsyncpa %s982, 1

</llo_original>
